<compile_context>
chip_gen: v7x
topology: tpu7x:2x2x1
jax: 0.10.0
libtpu: 0.0.40
codegen_flags: <defaults>
</compile_context>

<pallas_src>
import functools

import jax
import jax.numpy as jnp
from jax.experimental import pallas as pl
from jax.experimental.pallas import tpu as pltpu

_MIB = 1024 * 1024


def _round_up(x, m):
    return ((x + m - 1) // m) * m


def _vmem_budget_bytes():
    """~75% of per-core VMEM (96 MiB on v5e/v6e, 48 MiB on v7x / unknown)."""
    try:
        cap = int(pltpu.get_tpu_info().vmem_capacity_bytes)
    except Exception:
        cap = 64 * _MIB  # conservative: v7x per-TensorCore VMEM
    cap = max(32 * _MIB, min(cap, 128 * _MIB))
    return (3 * cap) // 4


@functools.partial(
    jax.jit,
    static_argnames=("m_out", "tm", "tv", "tk", "x_resident", "out_dtype",
                     "vmem_limit"),
)
def _clm_head_matmul(x2d, weight, bias2d, *, m_out, tm, tv, tk, x_resident,
                     out_dtype, vmem_limit):
    mx, H = x2d.shape
    V = weight.shape[0]

    nv = pl.cdiv(V, tv)
    nm = pl.cdiv(m_out, tm)
    nk = pl.cdiv(H, tk)
    # Partial K tiles would corrupt the reduction; the wrapper guarantees this.
    assert nk == 1 or H % tk == 0

    def kernel(x_ref, w_ref, b_ref, o_ref, acc_ref):
        k = pl.program_id(2)

        @pl.when(k == 0)
        def _init():
            acc_ref[...] = jnp.zeros_like(acc_ref)

        if x_resident:
            # The whole (padded) activation slab lives in VMEM; slice the
            # current (tm, tk) tile.  Static full-slab fast paths keep the
            # common case free of any dynamic-slice lowering.
            if nm == 1 and nk == 1:
                x_tile = x_ref[...]
            elif nk == 1:
                x_tile = x_ref[pl.ds(pl.program_id(1) * tm, tm), :]
            elif nm == 1:
                x_tile = x_ref[:, pl.ds(k * tk, tk)]
            else:
                x_tile = x_ref[pl.ds(pl.program_id(1) * tm, tm),
                               pl.ds(k * tk, tk)]
        else:
            x_tile = x_ref[...]

        # (tm, tk) x (tv, tk), contracting the last dims: MXU-native
        # "RHS transposed" form -> no in-kernel transpose of the weight tile.
        acc_ref[...] += jax.lax.dot_general(
            x_tile,
            w_ref[...],
            dimension_numbers=(((1,), (1,)), ((), ())),
            preferred_element_type=jnp.float32,
        )

        @pl.when(k == nk - 1)
        def _finalize():
            # Bias-add + cast epilogue: VPU work, hidden under the MXU.
            o_ref[...] = (acc_ref[...] + b_ref[...].astype(jnp.float32)
                          ).astype(o_ref.dtype)

    if x_resident:
        x_spec = pl.BlockSpec((mx, H), lambda j, i, k: (0, 0))   # fetched once
    else:
        x_spec = pl.BlockSpec((tm, tk), lambda j, i, k: (i, k))

    x_item = jnp.dtype(x2d.dtype).itemsize
    w_item = jnp.dtype(weight.dtype).itemsize
    o_item = jnp.dtype(out_dtype).itemsize
    # Weight is re-fetched once per token tile only when K-tiling is active.
    weight_passes = nm if nk > 1 else 1
    cost = pl.CostEstimate(
        flops=2 * m_out * V * H,
        transcendentals=0,
        bytes_accessed=(
            V * H * w_item * weight_passes
            + (mx * H if x_resident else m_out * H * nv) * x_item
            + m_out * V * o_item
            + V * jnp.dtype(bias2d.dtype).itemsize
        ),
    )

    return pl.pallas_call(
        kernel,
        out_shape=jax.ShapeDtypeStruct((m_out, V), out_dtype),
        grid_spec=pltpu.PrefetchScalarGridSpec(
            num_scalar_prefetch=0,
            grid=(nv, nm, nk),
            in_specs=[
                x_spec,
                pl.BlockSpec((tv, tk), lambda j, i, k: (j, k)),   # weight
                pl.BlockSpec((1, tv), lambda j, i, k: (0, j)),    # bias
            ],
            out_specs=pl.BlockSpec((tm, tv), lambda j, i, k: (i, j)),
            scratch_shapes=[pltpu.VMEM((tm, tv), jnp.float32)],
        ),
        compiler_params=pltpu.CompilerParams(
            # Vocab axis parallel -> megacore (v7x) splits V across cores so
            # each core streams a disjoint half of the weight; token axis is
            # deliberately "arbitrary" so the weight is never read twice.
            dimension_semantics=("parallel", "arbitrary", "arbitrary"),
            vmem_limit_bytes=int(vmem_limit),
        ),
        cost_estimate=cost,
    )(x2d, weight, bias2d)


def clm_head_forward(x, weight, bias=None, masked_tokens=None, *, out_dtype=None):
    """Pallas implementation of CLMHead.forward.

    x:             (..., H) activations.
    weight:        (V, H)   shared embedding / projection weight.
    bias:          (V,)     output bias (zeros if None, as in the module).
    masked_tokens: optional index (or boolean) array selecting rows of the
                   flattened (M, H) token slab before the projection.
    out_dtype:     logits dtype (defaults to x.dtype; pass jnp.bfloat16 to
                   halve the logits writeback if the downstream loss allows).
    """
    V, Hw = weight.shape
    H = x.shape[-1]
    assert H == Hw, f"hidden dim mismatch: x has {H}, weight has {Hw}"

    lead_shape = x.shape[:-1]
    x2d = x.reshape(-1, H)

    if masked_tokens is not None:
        # TODO(synk): a boolean mask with a data-dependent number of True
        # entries has no static-shape Pallas equivalent; the gather stays
        # plain-JAX glue (works eagerly for int or bool indexers).
        x2d = x2d[masked_tokens, :]
        lead_shape = (x2d.shape[0],)

    if bias is None:
        bias = jnp.zeros((V,), dtype=jnp.float32)

    out_dtype = jnp.dtype(x2d.dtype if out_dtype is None else out_dtype)

    M = x2d.shape[0]
    if M == 0:  # empty masked selection: nothing to project
        return jnp.zeros((*lead_shape, V), dtype=out_dtype)

    x_item = jnp.dtype(x2d.dtype).itemsize
    w_item = jnp.dtype(weight.dtype).itemsize
    budget = _vmem_budget_bytes()

    # ---- token tile & x residency -------------------------------------------
    # tm == M (full dim) whenever M fits one tile; otherwise MXU-shaped 256.
    tm = M if M <= 256 else 256
    m_pad = _round_up(M, tm)
    # Resident when the (double-buffered) slab takes at most ~1/3 of the
    # budget, leaving the rest for the weight/output pipeline.
    x_resident = 2 * m_pad * H * x_item <= budget // 3

    # ---- vocab tile -----------------------------------------------------------
    if V <= 512:
        tv = V                                   # full dim, no ragged tile
    elif (not x_resident) and budget >= 90 * _MIB:
        tv = 1024                                # v5e/v6e streaming: halve x re-streams
    else:
        tv = 512

    # ---- hidden (K) tile ------------------------------------------------------
    # Keep full H per step unless the double-buffered (tv, H) weight tile would
    # dominate VMEM (large H, esp. v7x's 64 MiB); then K-tile with a tk that
    # divides H exactly.
    tk = H
    w_tile_budget = budget // 3
    if 2 * tv * H * w_item > w_tile_budget:
        for cand in (2048, 1024, 512, 256):
            if H % cand == 0 and 2 * tv * cand * w_item <= w_tile_budget:
                tk = cand
                break
    if tk == H:
        # Could not (or did not need to) K-tile; if the weight tile is still
        # oversized, shrink the vocab tile rather than the MXU-facing dims.
        while tv % 256 == 0 and tv > 128 and 2 * tv * tk * w_item > w_tile_budget:
            tv //= 2
    elif x_resident and m_pad > tm:
        # K-tiling would re-stream the weight once per token tile; with x
        # resident we can afford one wide token tile so the weight is still
        # read exactly once per chip.
        tm = m_pad

    # Pad only the VMEM-resident slab (cheap: it fits VMEM by construction) so
    # the in-kernel dynamic slice never reads past the ref.  Weight, bias and
    # the logits are never padded or post-sliced: ragged trailing tiles are
    # handled by Pallas's masked reads/writes.
    if x_resident and m_pad != M:
        x2d = jnp.pad(x2d, ((0, m_pad - M), (0, 0)))

    # TODO(synk): v5e small-M path could deepen the weight pipeline with
    # pipeline_mode=pl.Buffered(3), and v6e could stream int8 weights with the
    # scale folded into the bias epilogue; both are left out to keep the
    # module's dtype contract and a minimal, portable API surface.

    out = _clm_head_matmul(
        x2d, weight, bias.reshape(1, V),
        m_out=M, tm=tm, tv=tv, tk=tk,
        x_resident=x_resident, out_dtype=out_dtype, vmem_limit=budget,
    )
    return out.reshape(*lead_shape, V)


if __name__ == "__main__":
    # Small shapes implied by the module: hidden=32, vocab(output_dim)=256,
    # batch=2, seq=8.
    B, T, H, V = 2, 8, 32, 256
    key = jax.random.PRNGKey(0)
    kx, kw = jax.random.split(key)

    x = jax.random.normal(kx, (B, T, H), dtype=jnp.float32)
    # CLMHead.__init__: weight (V, H) shared embedding, bias zeros(V).
    weight = jax.random.normal(kw, (V, H), dtype=jnp.float32) * 0.02
    bias = jnp.zeros((V,), dtype=jnp.float32)

    # --- no-mask path ---
    out = clm_head_forward(x, weight, bias)
    out = jax.block_until_ready(out)
    ref = (x.reshape(-1, H) @ weight.T + bias).reshape(B, T, V)
    assert out.shape == (B, T, V)
    assert jnp.allclose(out, ref, atol=1e-4, rtol=1e-4)

    # --- masked-tokens path (indices of masked positions in flattened slab) ---
    masked_idx = jnp.array([1, 3, 5, 10, 12], dtype=jnp.int32)
    out_m = clm_head_forward(x, weight, bias, masked_tokens=masked_idx)
    out_m = jax.block_until_ready(out_m)
    ref_m = x.reshape(-1, H)[masked_idx, :] @ weight.T + bias
    assert out_m.shape == (masked_idx.shape[0], V)
    assert jnp.allclose(out_m, ref_m, atol=1e-4, rtol=1e-4)

    print("KERNEL_OK")
</pallas_src>

<mosaic_0001>
module attributes {stable_mosaic.version = 11 : i64} {
  func.func @kernel(%arg0: i32, %arg1: i32, %arg2: i32, %arg3: memref<16x32xf32, #tpu.memory_space<vmem>>, %arg4: memref<256x32xf32, #tpu.memory_space<vmem>>, %arg5: memref<1x256xf32, #tpu.memory_space<vmem>>, %arg6: memref<16x256xf32, #tpu.memory_space<vmem>>, %arg7: memref<16x256xf32, #tpu.memory_space<vmem>>) attributes {dimension_semantics = [#tpu.dimension_semantics<parallel>, #tpu.dimension_semantics<arbitrary>, #tpu.dimension_semantics<arbitrary>], iteration_bounds = array<i64: 1, 1, 1>, scalar_prefetch = 0 : i64, scratch_operands = 1 : i64, tpu.core_type = #tpu.core_type<tc>, window_params = [{pipeline_mode = #tpu.pipeline_mode<synchronous>, transform_indices = @transform_0, window_bounds = array<i64: 16, 32>}, {transform_indices = @transform_1, window_bounds = array<i64: 256, 32>}, {transform_indices = @transform_2, window_bounds = array<i64: 1, 256>}, {transform_indices = @transform_3, window_bounds = array<i64: 16, 256>}]} {
    %c0_i32 = arith.constant 0 : i32
    %0 = arith.cmpi eq, %arg2, %c0_i32 : i32
    %1 = arith.extui %0 : i1 to i32
    %c0_i32_0 = arith.constant 0 : i32
    %2 = arith.cmpi ne, %1, %c0_i32_0 : i32
    scf.if %2 {
      %cst_10 = arith.constant 0.000000e+00 : f32
      %12 = vector.broadcast %cst_10 : f32 to vector<16x256xf32>
      %c0_11 = arith.constant 0 : index
      %c0_12 = arith.constant 0 : index
      %13 = vector.load %arg7[%c0_11, %c0_12] : memref<16x256xf32, #tpu.memory_space<vmem>>, vector<16x256xf32>
      tpu.vector_store %arg7[%c0_11, %c0_12], %12 {strides = array<i32>} : memref<16x256xf32, #tpu.memory_space<vmem>>, vector<16x256xf32>,
    } else {
    }
    %c0 = arith.constant 0 : index
    %c0_1 = arith.constant 0 : index
    %3 = vector.load %arg3[%c0, %c0_1] : memref<16x32xf32, #tpu.memory_space<vmem>>, vector<16x32xf32>
    %c0_2 = arith.constant 0 : index
    %c0_3 = arith.constant 0 : index
    %4 = vector.load %arg7[%c0_2, %c0_3] : memref<16x256xf32, #tpu.memory_space<vmem>>, vector<16x256xf32>
    %c0_4 = arith.constant 0 : index
    %c0_5 = arith.constant 0 : index
    %5 = vector.load %arg4[%c0_4, %c0_5] : memref<256x32xf32, #tpu.memory_space<vmem>>, vector<256x32xf32>
    %cst = arith.constant dense<0.000000e+00> : vector<16x256xf32>
    %6 = tpu.matmul %3, %5, %cst {dimension_numbers = #tpu.dot_dimension_numbers<[1], [1], [0], [0], [0, 0, 1, 0], [], []>} : vector<16x32xf32>, vector<256x32xf32>, vector<16x256xf32> -> vector<16x256xf32>
    %7 = arith.addf %4, %6 : vector<16x256xf32>
    %c0_6 = arith.constant 0 : index
    %c0_7 = arith.constant 0 : index
    %8 = vector.load %arg7[%c0_6, %c0_7] : memref<16x256xf32, #tpu.memory_space<vmem>>, vector<16x256xf32>
    tpu.vector_store %arg7[%c0_6, %c0_7], %7 {strides = array<i32>} : memref<16x256xf32, #tpu.memory_space<vmem>>, vector<16x256xf32>,
    %c0_i32_8 = arith.constant 0 : i32
    %9 = arith.cmpi eq, %arg2, %c0_i32_8 : i32
    %10 = arith.extui %9 : i1 to i32
    %c0_i32_9 = arith.constant 0 : i32
    %11 = arith.cmpi ne, %10, %c0_i32_9 : i32
    scf.if %11 {
      %c0_10 = arith.constant 0 : index
      %c0_11 = arith.constant 0 : index
      %12 = vector.load %arg7[%c0_10, %c0_11] : memref<16x256xf32, #tpu.memory_space<vmem>>, vector<16x256xf32>
      %c0_12 = arith.constant 0 : index
      %c0_13 = arith.constant 0 : index
      %13 = vector.load %arg5[%c0_12, %c0_13] : memref<1x256xf32, #tpu.memory_space<vmem>>, vector<1x256xf32>
      %14 = vector.broadcast %13 : vector<1x256xf32> to vector<16x256xf32>
      %15 = arith.addf %12, %14 : vector<16x256xf32>
      %c0_14 = arith.constant 0 : index
      %c0_15 = arith.constant 0 : index
      %16 = vector.load %arg6[%c0_14, %c0_15] : memref<16x256xf32, #tpu.memory_space<vmem>>, vector<16x256xf32>
      tpu.vector_store %arg6[%c0_14, %c0_15], %15 {strides = array<i32>} : memref<16x256xf32, #tpu.memory_space<vmem>>, vector<16x256xf32>,
    } else {
    }
    return
  }
  func.func @transform_0(%arg0: i32, %arg1: i32, %arg2: i32) -> (i32, i32) {
    %c0_i32 = arith.constant 0 : i32
    %c0_i32_0 = arith.constant 0 : i32
    %c0_i32_1 = arith.constant 0 : i32
    return %c0_i32, %c0_i32_0 : i32, i32
  }
  func.func @transform_1(%arg0: i32, %arg1: i32, %arg2: i32) -> (i32, i32) {
    %c0_i32 = arith.constant 0 : i32
    return %arg0, %arg2 : i32, i32
  }
  func.func @transform_2(%arg0: i32, %arg1: i32, %arg2: i32) -> (i32, i32) {
    %c0_i32 = arith.constant 0 : i32
    %c0_i32_0 = arith.constant 0 : i32
    return %c0_i32, %arg0 : i32, i32
  }
  func.func @transform_3(%arg0: i32, %arg1: i32, %arg2: i32) -> (i32, i32) {
    %c0_i32 = arith.constant 0 : i32
    return %arg1, %arg0 : i32, i32
  }
}

</mosaic_0001>

<llo_original>
// kernel: _clm_head_matmul.1
$region0: #{_clm_head_matmul.1}
  #allocation0 [shape = 'u32[]', space=smem, size = 0x4, offset = 0x4, fixed_abs, tag = 'smem constant byte address 0x4 - core index']
  #allocation1 [shape = 'u32[144,128]{1,0:T(1,128)}', space=vmem, size = 0x12000, scoped, tag = 'internal scratch']
  #allocation2 [shape = 'f32[16,256]{1,0:T(8,128)}', space=vmem, size = 0x4000, scoped, tag = 'scratch operand']
  %s0 = inlined_call_operand.vmem [shape: f32[16,32], index: 0, kind: input, shape index: {}]
  %s1 = inlined_call_operand.vmem [shape: f32[256,32], index: 1, kind: input, shape index: {}]
  %s2 = inlined_call_operand.vmem [shape: f32[1,256], index: 2, kind: input, shape index: {}]
  %s3 = inlined_call_operand.hbm [shape: f32[16,256], index: 3, kind: output, shape index: {}]
  %s4 = sld [smem:[#allocation0]]
  $region30: #{_clm_head_matmul.1} parent=0
    _
  %s6 = ssub.s32 1, %s4
  %s7 = scalar_select 0, %s6, %s4
  $region1: #{_clm_head_matmul.1} parent=0
    #allocation3 [shape = 'u8[16384]{0}', space=vmem, size = 0x4000, scoped, tag = 'output window, operand 0, single buffered']
    #allocation4 [shape = 's32[1]{0}', space=sflag, size = 0x4, scoped, tag = 'scoped memory for _clm_head_matmul.1']
    %8 = vsyncpa [#allocation4], 0
    // Predicated region
    $region2: #{_clm_head_matmul.1} parent=1 // pred_check
      _
    $region3: #{_clm_head_matmul.1} parent=1 // pred_check_branch
      %10 = sbr.rel (0) target = $region5
    $region4: #{_clm_head_matmul.1} parent=1 // pred_region
      _
    $region5: #{_clm_head_matmul.1} parent=1 // pred_fallthru
      _
    // Predicated region
    $region6: #{_clm_head_matmul.1} parent=1 // pred_check
      _
    $region7: #{_clm_head_matmul.1} parent=1 // pred_check_branch
      %12 = sbr.rel (0) target = $region9
    $region8: #{_clm_head_matmul.1} parent=1 // pred_region
      _
    $region9: #{_clm_head_matmul.1} parent=1 // pred_fallthru
      _
    // Predicated region
    $region10: #{_clm_head_matmul.1} parent=1 // pred_check
      _
    $region11: #{_clm_head_matmul.1} parent=1 // pred_check_branch
      %14 = sbr.rel (0) target = $region13
    $region12: #{_clm_head_matmul.1} parent=1 // pred_region
      _
    $region13: #{_clm_head_matmul.1} parent=1 // pred_fallthru
      _
    %p15 = scmp.eq.s32.totalorder 0, 0
    // Predicated region
    $region14: #{_clm_head_matmul.1} parent=1 // pred_check
      %p16 = pneg %p15
    $region15: #{_clm_head_matmul.1} parent=1 // pred_check_branch
      %18 = sbr.rel (%p16) target = $region17
    $region16: #{_clm_head_matmul.1} parent=1 // pred_region
      %19 = vst [vmem:[#allocation2] sm:$0xff] 0.0
      %20 = vst [vmem:[#allocation2 + $0x8] sm:$0xff] 0.0
      %21 = vst [vmem:[#allocation2 + $0x10] sm:$0xff] 0.0
      %22 = vst [vmem:[#allocation2 + $0x18] sm:$0xff] 0.0
    $region17: #{_clm_head_matmul.1} parent=1 // pred_fallthru
      _
    %v23 = vld [vmem:[%s0] sm:$0xff]
    %v24 = vld [vmem:[%s0 + $0x8] sm:$0xff]
    %v25 = vld [vmem:[#allocation2] sm:$0xff]
    %v26 = vld [vmem:[#allocation2 + $0x8] sm:$0xff]
    %v27 = vld [vmem:[#allocation2 + $0x10] sm:$0xff]
    %v28 = vld [vmem:[#allocation2 + $0x18] sm:$0xff]
    %v29 = vld [vmem:[%s1] sm:$0xff]
    %v30 = vld [vmem:[%s1 + $0x8] sm:$0xff]
    %v31 = vld [vmem:[%s1 + $0x10] sm:$0xff]
    %v32 = vld [vmem:[%s1 + $0x18] sm:$0xff]
    %v33 = vld [vmem:[%s1 + $0x20] sm:$0xff]
    %v34 = vld [vmem:[%s1 + $0x28] sm:$0xff]
    %v35 = vld [vmem:[%s1 + $0x30] sm:$0xff]
    %v36 = vld [vmem:[%s1 + $0x38] sm:$0xff]
    %v37 = vld [vmem:[%s1 + $0x40] sm:$0xff]
    %v38 = vld [vmem:[%s1 + $0x48] sm:$0xff]
    %v39 = vld [vmem:[%s1 + $0x50] sm:$0xff]
    %v40 = vld [vmem:[%s1 + $0x58] sm:$0xff]
    %v41 = vld [vmem:[%s1 + $0x60] sm:$0xff]
    %v42 = vld [vmem:[%s1 + $0x68] sm:$0xff]
    %v43 = vld [vmem:[%s1 + $0x70] sm:$0xff]
    %v44 = vld [vmem:[%s1 + $0x78] sm:$0xff]
    %v45 = vld [vmem:[%s1 + $0x80] sm:$0xff]
    %v46 = vld [vmem:[%s1 + $0x88] sm:$0xff]
    %v47 = vld [vmem:[%s1 + $0x90] sm:$0xff]
    %v48 = vld [vmem:[%s1 + $0x98] sm:$0xff]
    %v49 = vld [vmem:[%s1 + $0xa0] sm:$0xff]
    %v50 = vld [vmem:[%s1 + $0xa8] sm:$0xff]
    %v51 = vld [vmem:[%s1 + $0xb0] sm:$0xff]
    %v52 = vld [vmem:[%s1 + $0xb8] sm:$0xff]
    %v53 = vld [vmem:[%s1 + $0xc0] sm:$0xff]
    %v54 = vld [vmem:[%s1 + $0xc8] sm:$0xff]
    %v55 = vld [vmem:[%s1 + $0xd0] sm:$0xff]
    %v56 = vld [vmem:[%s1 + $0xd8] sm:$0xff]
    %v57 = vld [vmem:[%s1 + $0xe0] sm:$0xff]
    %v58 = vld [vmem:[%s1 + $0xe8] sm:$0xff]
    %v59 = vld [vmem:[%s1 + $0xf0] sm:$0xff]
    %v60 = vld [vmem:[%s1 + $0xf8] sm:$0xff]
    %vm61 = vcmask 261120
    %v63 = vsel %vm61, %v23, 0
    %v66 = vsel %vm61, %v24, 0
    %v69 = vsel %vm61, %v29, 0
    %v72 = vsel %vm61, %v30, 0
    %v75 = vsel %vm61, %v31, 0
    %v78 = vsel %vm61, %v32, 0
    %v81 = vsel %vm61, %v33, 0
    %v84 = vsel %vm61, %v34, 0
    %v87 = vsel %vm61, %v35, 0
    %v90 = vsel %vm61, %v36, 0
    %v93 = vsel %vm61, %v37, 0
    %v96 = vsel %vm61, %v38, 0
    %v99 = vsel %vm61, %v39, 0
    %v102 = vsel %vm61, %v40, 0
    %v105 = vsel %vm61, %v41, 0
    %v108 = vsel %vm61, %v42, 0
    %v111 = vsel %vm61, %v43, 0
    %v114 = vsel %vm61, %v44, 0
    %v117 = vsel %vm61, %v45, 0
    %v120 = vsel %vm61, %v46, 0
    %v123 = vsel %vm61, %v47, 0
    %v126 = vsel %vm61, %v48, 0
    %v129 = vsel %vm61, %v49, 0
    %v132 = vsel %vm61, %v50, 0
    %v135 = vsel %vm61, %v51, 0
    %v138 = vsel %vm61, %v52, 0
    %v141 = vsel %vm61, %v53, 0
    %v144 = vsel %vm61, %v54, 0
    %v147 = vsel %vm61, %v55, 0
    %v150 = vsel %vm61, %v56, 0
    %v153 = vsel %vm61, %v57, 0
    %v156 = vsel %vm61, %v58, 0
    %v159 = vsel %vm61, %v59, 0
    %v162 = vsel %vm61, %v60, 0
    %164 = vmatprep.subr.mxu0 0.0
    %165 = vmatpush1.xpose.msra.mxu0 %v69
    %166 = vmatprep.subr.mxu0 0.0
    %167 = vmatpush1.xpose.msra.mxu0 %v72
    %168 = vmatprep.subr.mxu0 0.0
    %169 = vmatpush1.xpose.msra.mxu0 %v75
    %170 = vmatprep.subr.mxu0 0.0
    %171 = vmatpush1.xpose.msra.mxu0 %v78
    %172 = vmatprep.subr.mxu0 0.0
    %173 = vmatpush1.xpose.msra.mxu0 %v81
    %174 = vmatprep.subr.mxu0 0.0
    %175 = vmatpush1.xpose.msra.mxu0 %v84
    %176 = vmatprep.subr.mxu0 0.0
    %177 = vmatpush1.xpose.msra.mxu0 %v87
    %178 = vmatprep.subr.mxu0 0.0
    %179 = vmatpush1.xpose.msra.mxu0 %v90
    %180 = vmatprep.subr.mxu0 0.0
    %181 = vmatpush1.xpose.msra.mxu0 %v93
    %182 = vmatprep.subr.mxu0 0.0
    %183 = vmatpush1.xpose.msra.mxu0 %v96
    %184 = vmatprep.subr.mxu0 0.0
    %185 = vmatpush1.xpose.msra.mxu0 %v99
    %186 = vmatprep.subr.mxu0 0.0
    %187 = vmatpush1.xpose.msra.mxu0 %v102
    %188 = vmatprep.subr.mxu0 0.0
    %189 = vmatpush1.xpose.msra.mxu0 %v105
    %190 = vmatprep.subr.mxu0 0.0
    %191 = vmatpush1.xpose.msra.mxu0 %v108
    %192 = vmatprep.subr.mxu0 0.0
    %193 = vmatpush1.xpose.msra.mxu0 %v111
    %194 = vmatprep.subr.mxu0 0.0
    %195 = vmatpush1.xpose.msra.mxu0 %v114
    %196 = vmatprep.subr.mxu0 0.0
    %197 = vmatpush1.xpose.msra.mxu0 %v117
    %198 = vmatprep.subr.mxu0 0.0
    %199 = vmatpush1.xpose.msra.mxu0 %v120
    %200 = vmatprep.subr.mxu0 0.0
    %201 = vmatpush1.xpose.msra.mxu0 %v123
    %202 = vmatprep.subr.mxu0 0.0
    %203 = vmatpush1.xpose.msra.mxu0 %v126
    %204 = vmatprep.subr.mxu0 0.0
    %205 = vmatpush1.xpose.msra.mxu0 %v129
    %206 = vmatprep.subr.mxu0 0.0
    %207 = vmatpush1.xpose.msra.mxu0 %v132
    %208 = vmatprep.subr.mxu0 0.0
    %209 = vmatpush1.xpose.msra.mxu0 %v135
    %210 = vmatprep.subr.mxu0 0.0
    %211 = vmatpush1.xpose.msra.mxu0 %v138
    %212 = vmatprep.subr.mxu0 0.0
    %213 = vmatpush1.xpose.msra.mxu0 %v141
    %214 = vmatprep.subr.mxu0 0.0
    %215 = vmatpush1.xpose.msra.mxu0 %v144
    %216 = vmatprep.subr.mxu0 0.0
    %217 = vmatpush1.xpose.msra.mxu0 %v147
    %218 = vmatprep.subr.mxu0 0.0
    %219 = vmatpush1.xpose.msra.mxu0 %v150
    %220 = vmatprep.subr.mxu0 0.0
    %221 = vmatpush1.xpose.msra.mxu0 %v153
    %222 = vmatprep.subr.mxu0 0.0
    %223 = vmatpush1.xpose.msra.mxu0 %v156
    %224 = vmatprep.subr.mxu0 0.0
    %225 = vmatpush1.xpose.msra.mxu0 %v159
    %226 = vmatprep.subr.mxu0 0.0
    %227 = vmatpush1.xpose.msra.mxu0 %v162
    %228 = vmatprep.mubr.f32.mxu0 0.0
    %229 = vmatmul.mubr.f32.gmra.mrb[0].mxu0 %v63
    %v230 = vpop.f32.mrb[0].mxu0
    %v231 = vadd.f32 0.0, %v230
    %v232 = vpop.f32.mrb[0].mxu0
    %v233 = vadd.f32 0.0, %v232
    %234 = vmatprep.mubr.f32.mxu0 0.0
    %235 = vmatmul.mubr.f32.gmra.mrb[0].mxu0 %v66
    %v236 = vpop.f32.mrb[0].mxu0
    %v237 = vadd.f32 0.0, %v236
    %v238 = vpop.f32.mrb[0].mxu0
    %v239 = vadd.f32 0.0, %v238
    %240 = vdwg.mxu0
    %v241 = vadd.f32 %v25, %v231
    %v242 = vadd.f32 %v26, %v233
    %v243 = vadd.f32 %v27, %v237
    %v244 = vadd.f32 %v28, %v239
    %245 = vst [vmem:[#allocation2] sm:$0xff] %v241
    %246 = vst [vmem:[#allocation2 + $0x8] sm:$0xff] %v242
    %247 = vst [vmem:[#allocation2 + $0x10] sm:$0xff] %v243
    %248 = vst [vmem:[#allocation2 + $0x18] sm:$0xff] %v244
    // Predicated region
    $region18: #{_clm_head_matmul.1} parent=1 // pred_check
      %p249 = pneg %p15
    $region19: #{_clm_head_matmul.1} parent=1 // pred_check_branch
      %251 = sbr.rel (%p249) target = $region21
    $region20: #{_clm_head_matmul.1} parent=1 // pred_region
      %v252 = vld [vmem:[#allocation2] sm:$0xff]
      %v253 = vld [vmem:[#allocation2 + $0x8] sm:$0xff]
      %v254 = vld [vmem:[#allocation2 + $0x10] sm:$0xff]
      %v255 = vld [vmem:[#allocation2 + $0x18] sm:$0xff]
      %v256 = vld [vmem:[%s2] sm:$0x3]
      %v258 = vlaneseq
      %v259 = vshrl.u32 %v258, 7
      %v260 = vsub.s32 0, %v259
      %v261 = vrot.slane %v256, %v260
      %v262 = vlaneseq
      %v263 = vshrl.u32 %v262, 7
      %v264 = vsub.s32 1, %v263
      %v265 = vrot.slane %v256, %v264
      %v268 = vadd.f32 %v252, %v261
      %v269 = vadd.f32 %v253, %v265
      %v270 = vadd.f32 %v254, %v261
      %v271 = vadd.f32 %v255, %v265
      %272 = vst [vmem:[#allocation3] sm:$0xff] %v268
      %273 = vst [vmem:[#allocation3 + $0x8] sm:$0xff] %v269
      %274 = vst [vmem:[#allocation3 + $0x10] sm:$0xff] %v270
      %275 = vst [vmem:[#allocation3 + $0x18] sm:$0xff] %v271
    $region21: #{_clm_head_matmul.1} parent=1 // pred_fallthru
      _
    // Predicated region
    $region22: #{_clm_head_matmul.1} parent=1 // pred_check
      _
    $region23: #{_clm_head_matmul.1} parent=1 // pred_check_branch
      %277 = sbr.rel (0) target = $region25
    $region24: #{_clm_head_matmul.1} parent=1 // pred_region
      %s279 = ssub.s32 512, 512
      %280 = vsyncadd [#allocation4], %s279
      %s281 = sshll.u32 [#allocation3], 4
      %s282 = int_to_ptr.vmem [resolvable:$true] %s281
      %287 = dma.vmem_to_hbm [thread:$0]  %s282, 512, %s3, [#allocation4], 256, 256, 16
    $region25: #{_clm_head_matmul.1} parent=1 // pred_fallthru
      _
    // Predicated region
    $region26: #{_clm_head_matmul.1} parent=1 // pred_check
      _
    $region27: #{_clm_head_matmul.1} parent=1 // pred_check_branch
      %289 = sbr.rel (0) target = $region29
    $region28: #{_clm_head_matmul.1} parent=1 // pred_region
      %290 = dma.done [#allocation4], 512
    $region29: #{_clm_head_matmul.1} parent=1 // pred_fallthru
      _
    %291 = vsyncpa [#allocation4], 1

</llo_original>
